<compile_context>
chip_gen: v7x
topology: tpu7x:2x2x1
jax: 0.10.0
libtpu: 0.0.40
codegen_flags: <defaults>
</compile_context>

<pallas_src>
import jax
import jax.numpy as jnp
from jax.experimental import pallas as pl
from jax.experimental.pallas import tpu as pltpu


def _round_up(x, m):
    return (x + m - 1) // m * m


def mlp_dec_kernel(x_ref, w0_ref, b0_ref, w1_ref, b1_ref, o_ref):
    # --- linear0: (TB, in_dim) @ (in_dim, hid_p) on the MXU, f32 accumulate ---
    h = jnp.dot(x_ref[...], w0_ref[...], preferred_element_type=jnp.float32)
    h = h + b0_ref[...]                      # (1, hid_p) broadcast over rows, f32
    # --- leaky_relu(negative_slope=0.2), f32 on the VPU (v5e-safe) -----------
    h = jnp.where(h > 0, h, 0.2 * h)
    # --- linear1: (TB, hid_p) @ (hid_p, out_p), bf16 operands, f32 accumulate -
    y = jnp.dot(h.astype(w1_ref.dtype), w1_ref[...],
                preferred_element_type=jnp.float32)
    y = y + b1_ref[...]                      # (1, out_p) broadcast, f32
    # Lane-dense (out_p multiple of 128) unmasked store.
    o_ref[...] = y.astype(o_ref.dtype)


def mlp_dec(x, w0, b0, w1, b1, *, block_b=None, compute_dtype=jnp.bfloat16):
    """Fused MLP_Dec forward (eval-mode dropout = identity).

    x : (B, in_dim)
    w0: (in_dim, hid_dim)   (nn.Linear weight pre-transposed)
    b0: (hid_dim,) or (1, hid_dim)
    w1: (hid_dim, out_dim)  (nn.Linear weight pre-transposed)
    b1: (out_dim,) or (1, out_dim)
    """
    B, in_dim = x.shape
    hid_dim = w0.shape[1]
    out_dim = w1.shape[1]
    out_dtype = x.dtype

    # ---- wrapper-side padding (pure layout plumbing, weights are tiny) ------
    hid_p = _round_up(hid_dim, 128)
    out_p = _round_up(out_dim, 128)

    w0p = jnp.pad(w0, ((0, 0), (0, hid_p - hid_dim))).astype(compute_dtype)
    b0p = jnp.pad(jnp.reshape(b0, (1, -1)),
                  ((0, 0), (0, hid_p - hid_dim))).astype(jnp.float32)
    w1p = jnp.pad(w1, ((0, hid_p - hid_dim),
                       (0, out_p - out_dim))).astype(compute_dtype)
    b1p = jnp.pad(jnp.reshape(b1, (1, -1)),
                  ((0, 0), (0, out_p - out_dim))).astype(jnp.float32)

    xc = x.astype(compute_dtype)
    Bp = _round_up(B, 8)                       # sublane alignment for the batch tile
    if Bp != B:
        xc = jnp.pad(xc, ((0, Bp - B), (0, 0)))

    # ---- batch tile: keep many grid steps for pipelining / megacore ---------
    if block_b is None:
        for cand in (256, 512, 128, 64, 32, 16, 8):
            if Bp % cand == 0:
                block_b = cand
                break
        else:
            block_b = Bp
    if block_b % 8 != 0:
        raise ValueError(f"block_b={block_b} must be a multiple of 8 sublanes")
    if Bp % block_b != 0:
        raise ValueError(f"padded batch {Bp} must be divisible by block_b={block_b}")

    grid = (Bp // block_b,)

    y_pad = pl.pallas_call(
        mlp_dec_kernel,
        out_shape=jax.ShapeDtypeStruct((Bp, out_p), out_dtype),
        grid_spec=pltpu.PrefetchScalarGridSpec(
            num_scalar_prefetch=0,
            grid=grid,
            in_specs=[
                pl.BlockSpec((block_b, in_dim), lambda i: (i, 0)),   # x tile (streamed)
                pl.BlockSpec((in_dim, hid_p), lambda i: (0, 0)),     # W0 (resident)
                pl.BlockSpec((1, hid_p), lambda i: (0, 0)),          # b0 (resident)
                pl.BlockSpec((hid_p, out_p), lambda i: (0, 0)),      # W1 (resident)
                pl.BlockSpec((1, out_p), lambda i: (0, 0)),          # b1 (resident)
            ],
            out_specs=pl.BlockSpec((block_b, out_p), lambda i: (i, 0)),
        ),
        compiler_params=pltpu.CompilerParams(
            dimension_semantics=("parallel",),
        ),
    )(xc, w0p, b0p, w1p, b1p)

    # Strip batch + lane padding back to the logical output shape.
    return y_pad[:B, :out_dim]


def mlp_dec_ref(x, w0, b0, w1, b1, compute_dtype=jnp.bfloat16):
    """Pure-JAX reference with the same precision path as the kernel."""
    xc = x.astype(compute_dtype)
    h = jnp.dot(xc, w0.astype(compute_dtype),
                preferred_element_type=jnp.float32) + jnp.reshape(b0, (1, -1))
    h = jnp.where(h > 0, h, 0.2 * h)
    y = jnp.dot(h.astype(compute_dtype), w1.astype(compute_dtype),
                preferred_element_type=jnp.float32) + jnp.reshape(b1, (1, -1))
    return y.astype(x.dtype)


if __name__ == "__main__":
    # Shapes consistent with the module: in_dim=32, hid_dim=64, output_dim=16.
    # B=512 so the default 256-row tile gives a 2-step pipelined grid.
    B, in_dim, hid_dim, out_dim = 512, 32, 64, 16

    key = jax.random.PRNGKey(0)
    kx, k0w, k0b, k1w, k1b = jax.random.split(key, 5)

    x = jax.random.normal(kx, (B, in_dim), dtype=jnp.float32)

    # Deterministic parameter init (nn.Linear shapes, stored pre-transposed as
    # (in, out)).  linear0 ~ kaiming_normal for leaky_relu(0.2); linear1 ~ xavier.
    gain0 = (2.0 / (1.0 + 0.2 ** 2)) ** 0.5
    w0 = jax.random.normal(k0w, (in_dim, hid_dim), dtype=jnp.float32) * (
        gain0 / (in_dim ** 0.5)
    )
    b0 = jax.random.normal(k0b, (1, hid_dim), dtype=jnp.float32) * 0.01
    w1 = jax.random.normal(k1w, (hid_dim, out_dim), dtype=jnp.float32) * (
        (2.0 / (hid_dim + out_dim)) ** 0.5
    )
    b1 = jax.random.normal(k1b, (1, out_dim), dtype=jnp.float32) * 0.01

    y = mlp_dec(x, w0, b0, w1, b1)
    jax.block_until_ready(y)

    y_ref = mlp_dec_ref(x, w0, b0, w1, b1)
    assert y.shape == (B, out_dim)
    assert jnp.allclose(y, y_ref, atol=1e-3, rtol=1e-3), (
        float(jnp.max(jnp.abs(y - y_ref)))
    )

    print("KERNEL_OK")
</pallas_src>

<mosaic_0001>
module attributes {stable_mosaic.version = 11 : i64} {
  func.func @mlp_dec_kernel(%arg0: i32, %arg1: memref<256x32xbf16, #tpu.memory_space<vmem>>, %arg2: memref<32x128xbf16, #tpu.memory_space<vmem>>, %arg3: memref<1x128xf32, #tpu.memory_space<vmem>>, %arg4: memref<128x128xbf16, #tpu.memory_space<vmem>>, %arg5: memref<1x128xf32, #tpu.memory_space<vmem>>, %arg6: memref<256x128xf32, #tpu.memory_space<vmem>>) attributes {dimension_semantics = [#tpu.dimension_semantics<parallel>], iteration_bounds = array<i64: 2>, scalar_prefetch = 0 : i64, scratch_operands = 0 : i64, tpu.core_type = #tpu.core_type<tc>, window_params = [{transform_indices = @transform_0, window_bounds = array<i64: 256, 32>}, {pipeline_mode = #tpu.pipeline_mode<synchronous>, transform_indices = @transform_1, window_bounds = array<i64: 32, 128>}, {pipeline_mode = #tpu.pipeline_mode<synchronous>, transform_indices = @transform_2, window_bounds = array<i64: 1, 128>}, {pipeline_mode = #tpu.pipeline_mode<synchronous>, transform_indices = @transform_3, window_bounds = array<i64: 128, 128>}, {pipeline_mode = #tpu.pipeline_mode<synchronous>, transform_indices = @transform_4, window_bounds = array<i64: 1, 128>}, {transform_indices = @transform_5, window_bounds = array<i64: 256, 128>}]} {
    %c0 = arith.constant 0 : index
    %c0_0 = arith.constant 0 : index
    %0 = vector.load %arg1[%c0, %c0_0] : memref<256x32xbf16, #tpu.memory_space<vmem>>, vector<256x32xbf16>
    %c0_1 = arith.constant 0 : index
    %c0_2 = arith.constant 0 : index
    %1 = vector.load %arg2[%c0_1, %c0_2] : memref<32x128xbf16, #tpu.memory_space<vmem>>, vector<32x128xbf16>
    %cst = arith.constant dense<0.000000e+00> : vector<256x128xf32>
    %2 = tpu.matmul %0, %1, %cst {dimension_numbers = #tpu.dot_dimension_numbers<[1], [0], [0], [1], [0, 0, 1, 1], [], []>} : vector<256x32xbf16>, vector<32x128xbf16>, vector<256x128xf32> -> vector<256x128xf32>
    %c0_3 = arith.constant 0 : index
    %c0_4 = arith.constant 0 : index
    %3 = vector.load %arg3[%c0_3, %c0_4] : memref<1x128xf32, #tpu.memory_space<vmem>>, vector<1x128xf32>
    %4 = vector.broadcast %3 : vector<1x128xf32> to vector<256x128xf32>
    %5 = arith.addf %2, %4 : vector<256x128xf32>
    %cst_5 = arith.constant 0.000000e+00 : f32
    %6 = vector.broadcast %cst_5 : f32 to vector<256x128xf32>
    %7 = arith.cmpf ogt, %5, %6 : vector<256x128xf32>
    %cst_6 = arith.constant 2.000000e-01 : f32
    %8 = vector.broadcast %cst_6 : f32 to vector<256x128xf32>
    %9 = arith.mulf %8, %5 : vector<256x128xf32>
    %10 = arith.select %7, %5, %9 : vector<256x128xi1>, vector<256x128xf32>
    %11 = arith.truncf %10 : vector<256x128xf32> to vector<256x128xbf16>
    %c0_7 = arith.constant 0 : index
    %c0_8 = arith.constant 0 : index
    %12 = vector.load %arg4[%c0_7, %c0_8] : memref<128x128xbf16, #tpu.memory_space<vmem>>, vector<128x128xbf16>
    %cst_9 = arith.constant dense<0.000000e+00> : vector<256x128xf32>
    %13 = tpu.matmul %11, %12, %cst_9 {dimension_numbers = #tpu.dot_dimension_numbers<[1], [0], [0], [1], [0, 0, 1, 1], [], []>} : vector<256x128xbf16>, vector<128x128xbf16>, vector<256x128xf32> -> vector<256x128xf32>
    %c0_10 = arith.constant 0 : index
    %c0_11 = arith.constant 0 : index
    %14 = vector.load %arg5[%c0_10, %c0_11] : memref<1x128xf32, #tpu.memory_space<vmem>>, vector<1x128xf32>
    %15 = vector.broadcast %14 : vector<1x128xf32> to vector<256x128xf32>
    %16 = arith.addf %13, %15 : vector<256x128xf32>
    %c0_12 = arith.constant 0 : index
    %c0_13 = arith.constant 0 : index
    %17 = vector.load %arg6[%c0_12, %c0_13] : memref<256x128xf32, #tpu.memory_space<vmem>>, vector<256x128xf32>
    tpu.vector_store %arg6[%c0_12, %c0_13], %16 {strides = array<i32>} : memref<256x128xf32, #tpu.memory_space<vmem>>, vector<256x128xf32>,
    return
  }
  func.func @transform_0(%arg0: i32) -> (i32, i32) {
    %c0_i32 = arith.constant 0 : i32
    %c0_i32_0 = arith.constant 0 : i32
    return %arg0, %c0_i32 : i32, i32
  }
  func.func @transform_1(%arg0: i32) -> (i32, i32) {
    %c0_i32 = arith.constant 0 : i32
    %c0_i32_0 = arith.constant 0 : i32
    %c0_i32_1 = arith.constant 0 : i32
    return %c0_i32, %c0_i32_0 : i32, i32
  }
  func.func @transform_2(%arg0: i32) -> (i32, i32) {
    %c0_i32 = arith.constant 0 : i32
    %c0_i32_0 = arith.constant 0 : i32
    %c0_i32_1 = arith.constant 0 : i32
    return %c0_i32, %c0_i32_0 : i32, i32
  }
  func.func @transform_3(%arg0: i32) -> (i32, i32) {
    %c0_i32 = arith.constant 0 : i32
    %c0_i32_0 = arith.constant 0 : i32
    %c0_i32_1 = arith.constant 0 : i32
    return %c0_i32, %c0_i32_0 : i32, i32
  }
  func.func @transform_4(%arg0: i32) -> (i32, i32) {
    %c0_i32 = arith.constant 0 : i32
    %c0_i32_0 = arith.constant 0 : i32
    %c0_i32_1 = arith.constant 0 : i32
    return %c0_i32, %c0_i32_0 : i32, i32
  }
  func.func @transform_5(%arg0: i32) -> (i32, i32) {
    %c0_i32 = arith.constant 0 : i32
    %c0_i32_0 = arith.constant 0 : i32
    return %arg0, %c0_i32 : i32, i32
  }
}

</mosaic_0001>

<llo_original>
// kernel: tpu_custom_call.1
$region0: #{tpu_custom_call.1}
  #allocation0 [shape = 'u32[]', space=smem, size = 0x4, offset = 0x4, fixed_abs, tag = 'smem constant byte address 0x4 - core index']
  #allocation1 [shape = 'u32[144,128]{1,0:T(1,128)}', space=vmem, size = 0x12000, scoped, tag = 'internal scratch']
  %s0 = inlined_call_operand.vmem [shape: bf16[512,32], index: 0, kind: input, shape index: {}]
  %s1 = inlined_call_operand.vmem [shape: bf16[32,128], index: 1, kind: input, shape index: {}]
  %s2 = inlined_call_operand.vmem [shape: f32[1,128], index: 2, kind: input, shape index: {}]
  %s3 = inlined_call_operand.vmem [shape: bf16[128,128], index: 3, kind: input, shape index: {}]
  %s4 = inlined_call_operand.vmem [shape: f32[1,128], index: 4, kind: input, shape index: {}]
  %s5 = inlined_call_operand.hbm [shape: f32[512,128], index: 5, kind: output, shape index: {}]
  %s6 = sld [smem:[#allocation0]]
  $region53: #{tpu_custom_call.1} parent=0
    _
  %s8 = ssub.s32 1, %s6
  %s9 = scalar_select 0, %s8, %s6
  $region1: #{tpu_custom_call.1} parent=0
    #allocation2 [shape = 'u8[262144]{0}', space=vmem, size = 0x40000, scoped, tag = 'output window, operand 0']
    #allocation3 [shape = 's32[2]{0}', space=sflag, size = 0x8, scoped, tag = 'scoped memory for tpu_custom_call.1']
    %10 = vsyncpa [#allocation3], 0
    %s11 = scalar_lea.sflag [#allocation3], 1
    %12 = vsyncpa %s11, 0
    loop: start=0, step=1, limit=4
    $region2: #{tpu_custom_call.1} parent=1 // loop_pre_header
      _
    $region3: #{tpu_custom_call.1} parent=1 // loop_header
      %s14 = sphi 0, %s18
      %p15 = scmp.ge.s32.totalorder %s14, 4
      %s24 = sphi 0, %s26
      %s27 = sphi 0, %s24
      %s28 = sphi 0, %s27
      %s44 = sphi 0, %s28
      %s48 = sphi 0, %s48
      %s50 = sphi 0, %s48
      %s51 = sphi 0, %s50
      %s65 = sphi 0, %s51
      %s69 = sphi 0, %s69
      %s71 = sphi 0, %s69
      %s72 = sphi 0, %s71
      %s86 = sphi 0, %s72
      %s90 = sphi 0, %s90
      %s92 = sphi 0, %s90
      %s93 = sphi 0, %s92
      %s107 = sphi 0, %s93
      %s111 = sphi 0, %s111
      %s113 = sphi 0, %s111
      %s114 = sphi 0, %s113
      %s128 = sphi 0, %s114
      %s134 = sphi 0, %s136
      %s137 = sphi 0, %s134
      %s138 = sphi 0, %s137
      %s154 = sphi 0, %s138
    $region4: #{tpu_custom_call.1} parent=1 // loop_header_branch
      %17 = sbr.rel (%p15) target = $region8
    $region5: #{tpu_custom_call.1} parent=1 // loop_body
      %s19 = ssub.s32 %s14, 1
      %s20 = ssub.s32 %s14, 2
      %s21 = sadd.s32 %s14, 1
      %s22 = ssub.s32 %s14, %s21
      %p23 = scmp.eq.s32.totalorder %s22, 0
      %s25 = sadd.s32 %s24, 1
      %s26 = scalar_select %p23, %s24, %s25
      %p29 = pneg %p23
      %p30 = scmp.eq.s32.totalorder %s14, 1
      %p31 = por %p29, %p30
      %p32 = scmp.ne.s32.totalorder %s24, %s27
      %p33 = scmp.eq.s32.totalorder %s14, 0
      %p34 = por %p32, %p33
      %p35 = scmp.ne.s32.totalorder %s24, %s27
      %p36 = scmp.eq.s32.totalorder %s19, 1
      %p37 = por %p35, %p36
      %p38 = scmp.ne.s32.totalorder %s27, %s28
      %p39 = scmp.eq.s32.totalorder %s19, 0
      %p40 = por %p38, %p39
      %p41 = scmp.ne.s32.totalorder %s27, %s28
      %p42 = scmp.eq.s32.totalorder %s20, 1
      %p43 = por %p41, %p42
      %p45 = scmp.ne.s32.totalorder %s28, %s44
      %p46 = scmp.eq.s32.totalorder %s20, 0
      %p47 = por %p45, %p46
      %s49 = sadd.s32 %s48, 1
      %p52 = scmp.eq.s32.totalorder %s14, 1
      %p53 = scmp.ne.s32.totalorder %s48, %s50
      %p54 = scmp.eq.s32.totalorder %s14, 0
      %p55 = por %p53, %p54
      %p56 = scmp.ne.s32.totalorder %s48, %s50
      %p57 = scmp.eq.s32.totalorder %s19, 1
      %p58 = por %p56, %p57
      %p59 = scmp.ne.s32.totalorder %s50, %s51
      %p60 = scmp.eq.s32.totalorder %s19, 0
      %p61 = por %p59, %p60
      %p62 = scmp.ne.s32.totalorder %s50, %s51
      %p63 = scmp.eq.s32.totalorder %s20, 1
      %p64 = por %p62, %p63
      %p66 = scmp.ne.s32.totalorder %s51, %s65
      %p67 = scmp.eq.s32.totalorder %s20, 0
      %p68 = por %p66, %p67
      %s70 = sadd.s32 %s69, 1
      %p73 = scmp.eq.s32.totalorder %s14, 1
      %p74 = scmp.ne.s32.totalorder %s69, %s71
      %p75 = scmp.eq.s32.totalorder %s14, 0
      %p76 = por %p74, %p75
      %p77 = scmp.ne.s32.totalorder %s69, %s71
      %p78 = scmp.eq.s32.totalorder %s19, 1
      %p79 = por %p77, %p78
      %p80 = scmp.ne.s32.totalorder %s71, %s72
      %p81 = scmp.eq.s32.totalorder %s19, 0
      %p82 = por %p80, %p81
      %p83 = scmp.ne.s32.totalorder %s71, %s72
      %p84 = scmp.eq.s32.totalorder %s20, 1
      %p85 = por %p83, %p84
      %p87 = scmp.ne.s32.totalorder %s72, %s86
      %p88 = scmp.eq.s32.totalorder %s20, 0
      %p89 = por %p87, %p88
      %s91 = sadd.s32 %s90, 1
      %p94 = scmp.eq.s32.totalorder %s14, 1
      %p95 = scmp.ne.s32.totalorder %s90, %s92
      %p96 = scmp.eq.s32.totalorder %s14, 0
      %p97 = por %p95, %p96
      %p98 = scmp.ne.s32.totalorder %s90, %s92
      %p99 = scmp.eq.s32.totalorder %s19, 1
      %p100 = por %p98, %p99
      %p101 = scmp.ne.s32.totalorder %s92, %s93
      %p102 = scmp.eq.s32.totalorder %s19, 0
      %p103 = por %p101, %p102
      %p104 = scmp.ne.s32.totalorder %s92, %s93
      %p105 = scmp.eq.s32.totalorder %s20, 1
      %p106 = por %p104, %p105
      %p108 = scmp.ne.s32.totalorder %s93, %s107
      %p109 = scmp.eq.s32.totalorder %s20, 0
      %p110 = por %p108, %p109
      %s112 = sadd.s32 %s111, 1
      %p115 = scmp.eq.s32.totalorder %s14, 1
      %p116 = scmp.ne.s32.totalorder %s111, %s113
      %p117 = scmp.eq.s32.totalorder %s14, 0
      %p118 = por %p116, %p117
      %p119 = scmp.ne.s32.totalorder %s111, %s113
      %p120 = scmp.eq.s32.totalorder %s19, 1
      %p121 = por %p119, %p120
      %p122 = scmp.ne.s32.totalorder %s113, %s114
      %p123 = scmp.eq.s32.totalorder %s19, 0
      %p124 = por %p122, %p123
      %p125 = scmp.ne.s32.totalorder %s113, %s114
      %p126 = scmp.eq.s32.totalorder %s20, 1
      %p127 = por %p125, %p126
      %p129 = scmp.ne.s32.totalorder %s114, %s128
      %p130 = scmp.eq.s32.totalorder %s20, 0
      %p131 = por %p129, %p130
      %s132 = ssub.s32 %s14, %s21
      %p133 = scmp.eq.s32.totalorder %s132, 0
      %s135 = sadd.s32 %s134, 1
      %s136 = scalar_select %p133, %s134, %s135
      %p139 = pneg %p133
      %p140 = scmp.eq.s32.totalorder %s14, 1
      %p141 = por %p139, %p140
      %p142 = scmp.ne.s32.totalorder %s134, %s137
      %p143 = scmp.eq.s32.totalorder %s14, 0
      %p144 = por %p142, %p143
      %p145 = scmp.ne.s32.totalorder %s134, %s137
      %p146 = scmp.eq.s32.totalorder %s19, 1
      %p147 = por %p145, %p146
      %p148 = scmp.ne.s32.totalorder %s137, %s138
      %p149 = scmp.eq.s32.totalorder %s19, 0
      %p150 = por %p148, %p149
      %p151 = scmp.ne.s32.totalorder %s137, %s138
      %p152 = scmp.eq.s32.totalorder %s20, 1
      %p153 = por %p151, %p152
      %p155 = scmp.ne.s32.totalorder %s138, %s154
      %p156 = scmp.eq.s32.totalorder %s20, 0
      %p157 = por %p155, %p156
      %p158 = scmp.le.s32.totalorder 1, %s14
      %p159 = scmp.lt.s32.totalorder %s14, 3
      %p160 = pnand %p158, %p159
      %p161 = pneg %p160
      // Predicated region
      $region9: #{tpu_custom_call.1} parent=5 // pred_check
        _
      $region10: #{tpu_custom_call.1} parent=5 // pred_check_branch
        %163 = sbr.rel (%p160) target = $region12
      $region11: #{tpu_custom_call.1} parent=5 // pred_region
        %s164 = ssub.s32 %s14, 1
        // Predicated region
        $region13: #{tpu_custom_call.1} parent=11 // pred_check
          %p165 = pneg %p61
        $region14: #{tpu_custom_call.1} parent=11 // pred_check_branch
          %167 = sbr.rel (%p165) target = $region16
        $region15: #{tpu_custom_call.1} parent=11 // pred_region
          _
        $region16: #{tpu_custom_call.1} parent=11 // pred_fallthru
          _
        // Predicated region
        $region17: #{tpu_custom_call.1} parent=11 // pred_check
          %p168 = pneg %p82
        $region18: #{tpu_custom_call.1} parent=11 // pred_check_branch
          %170 = sbr.rel (%p168) target = $region20
        $region19: #{tpu_custom_call.1} parent=11 // pred_region
          _
        $region20: #{tpu_custom_call.1} parent=11 // pred_fallthru
          _
        // Predicated region
        $region21: #{tpu_custom_call.1} parent=11 // pred_check
          %p171 = pneg %p103
        $region22: #{tpu_custom_call.1} parent=11 // pred_check_branch
          %173 = sbr.rel (%p171) target = $region24
        $region23: #{tpu_custom_call.1} parent=11 // pred_region
          _
        $region24: #{tpu_custom_call.1} parent=11 // pred_fallthru
          _
        // Predicated region
        $region25: #{tpu_custom_call.1} parent=11 // pred_check
          %p174 = pneg %p124
        $region26: #{tpu_custom_call.1} parent=11 // pred_check_branch
          %176 = sbr.rel (%p174) target = $region28
        $region27: #{tpu_custom_call.1} parent=11 // pred_region
          _
        $region28: #{tpu_custom_call.1} parent=11 // pred_fallthru
          _
      $region12: #{tpu_custom_call.1} parent=5 // pred_fallthru
        _
      %p177 = scmp.lt.s32.totalorder %s14, 2
      // Predicated region
      $region29: #{tpu_custom_call.1} parent=5 // pred_check
        %p178 = pneg %p177
      $region30: #{tpu_custom_call.1} parent=5 // pred_check_branch
        %180 = sbr.rel (%p178) target = $region32
      $region31: #{tpu_custom_call.1} parent=5 // pred_region
        // Predicated region
        $region33: #{tpu_custom_call.1} parent=31 // pred_check
          %p181 = pneg %p34
        $region34: #{tpu_custom_call.1} parent=31 // pred_check_branch
          %183 = sbr.rel (%p181) target = $region36
        $region35: #{tpu_custom_call.1} parent=31 // pred_region
          %s184 = smul.u32 32, %s14
          %p185 = scmp.lt.s32.totalorder %s184, 63
          %s186 = scalar_select %p185, %s184, 63
          %s187 = smul.addr %s186, 4
          %s188 = scalar_lea.vmem %s0, %s187
          %s189 = smul.u32 32, %s14
        $region36: #{tpu_custom_call.1} parent=31 // pred_fallthru
          _
      $region32: #{tpu_custom_call.1} parent=5 // pred_fallthru
        _
      %p190 = scmp.le.s32.totalorder 1, %s14
      %p191 = scmp.lt.s32.totalorder %s14, 3
      %p192 = pnand %p190, %p191
      %p193 = pneg %p192
      // Predicated region
      $region37: #{tpu_custom_call.1} parent=5 // pred_check
        _
      $region38: #{tpu_custom_call.1} parent=5 // pred_check_branch
        %195 = sbr.rel (%p192) target = $region40
      $region39: #{tpu_custom_call.1} parent=5 // pred_region
        %s196 = ssub.s32 %s14, 1
        %s197 = smul.u32 32, %s19
        %p198 = scmp.lt.s32.totalorder %s197, 63
        %s199 = scalar_select %p198, %s197, 63
        %s200 = smul.addr %s199, 4
        %s201 = scalar_lea.vmem %s0, %s200
        %p202 = pneg %p40
        %p203 = pneg %p37
        %p204 = pneg %p61
        %p205 = pneg %p58
        %p206 = pneg %p82
        %p207 = pneg %p79
        %p208 = pneg %p103
        %p209 = pneg %p100
        %p210 = pneg %p124
        %p211 = pneg %p121
        %p212 = pneg %p150
        %p213 = pneg %p147
        %s214 = sand.u32 %s137, 1
        %s215 = scalar_lea.sflag [#allocation3], %s214
        %s216 = sand.u32 %s137, 1
        %s217 = smul.addr %s216, 256
        %s218 = scalar_lea.vmem [#allocation2], %s217
        %s219 = smul.u32 32, %s19
        %p220 = scmp.lt.s32.totalorder %s219, 63
        %s221 = scalar_select %p220, %s219, 63
        %s222 = smul.addr %s221, 4
        %s223 = scalar_lea.vmem %s0, %s222
        %s224 = smul.u32 32, %s19
        %s225 = smul.u32 32, %s19
        %v227 = vld [vmem:[%s223] sm:$0xf]
        %v228 = vld [vmem:[%s223 + $0x4] sm:$0xf]
        %v229 = vld [vmem:[%s223 + $0x8] sm:$0xf]
        %v230 = vld [vmem:[%s223 + $0xc] sm:$0xf]
        %v231 = vld [vmem:[%s223 + $0x10] sm:$0xf]
        %v232 = vld [vmem:[%s223 + $0x14] sm:$0xf]
        %v233 = vld [vmem:[%s223 + $0x18] sm:$0xf]
        %v234 = vld [vmem:[%s223 + $0x1c] sm:$0xf]
        %v235 = vld [vmem:[%s223 + $0x20] sm:$0xf]
        %v236 = vld [vmem:[%s223 + $0x24] sm:$0xf]
        %v237 = vld [vmem:[%s223 + $0x28] sm:$0xf]
        %v238 = vld [vmem:[%s223 + $0x2c] sm:$0xf]
        %v239 = vld [vmem:[%s223 + $0x30] sm:$0xf]
        %v240 = vld [vmem:[%s223 + $0x34] sm:$0xf]
        %v241 = vld [vmem:[%s223 + $0x38] sm:$0xf]
        %v242 = vld [vmem:[%s223 + $0x3c] sm:$0xf]
        %v243 = vld [vmem:[%s223 + $0x40] sm:$0xf]
        %v244 = vld [vmem:[%s223 + $0x44] sm:$0xf]
        %v245 = vld [vmem:[%s223 + $0x48] sm:$0xf]
        %v246 = vld [vmem:[%s223 + $0x4c] sm:$0xf]
        %v247 = vld [vmem:[%s223 + $0x50] sm:$0xf]
        %v248 = vld [vmem:[%s223 + $0x54] sm:$0xf]
        %v249 = vld [vmem:[%s223 + $0x58] sm:$0xf]
        %v250 = vld [vmem:[%s223 + $0x5c] sm:$0xf]
        %v251 = vld [vmem:[%s223 + $0x60] sm:$0xf]
        %v252 = vld [vmem:[%s223 + $0x64] sm:$0xf]
        %v253 = vld [vmem:[%s223 + $0x68] sm:$0xf]
        %v254 = vld [vmem:[%s223 + $0x6c] sm:$0xf]
        %v255 = vld [vmem:[%s223 + $0x70] sm:$0xf]
        %v256 = vld [vmem:[%s223 + $0x74] sm:$0xf]
        %v257 = vld [vmem:[%s223 + $0x78] sm:$0xf]
        %v258 = vld [vmem:[%s223 + $0x7c] sm:$0xf]
        %v259 = vld [vmem:[%s1] sm:$0xf]
        %v260 = vld [vmem:[%s1 + $0x4] sm:$0xf]
        %v261 = vld [vmem:[%s1 + $0x8] sm:$0xf]
        %v262 = vld [vmem:[%s1 + $0xc] sm:$0xf]
        %v263 = vld [vmem:[%s2] sm:$0x1]
        %v265 = vlaneseq
        %v266 = vshrl.u32 %v265, 7
        %v267 = vsub.s32 0, %v266
        %v268 = vrot.slane %v263, %v267
        %v302 = vunpack.c.l.b16 %v227
        %v303 = vunpack.c.l.b16 %v228
        %v304 = vunpack.c.l.b16 %v229
        %v305 = vunpack.c.l.b16 %v230
        %v306 = vunpack.c.l.b16 %v231
        %v307 = vunpack.c.l.b16 %v232
        %v308 = vunpack.c.l.b16 %v233
        %v309 = vunpack.c.l.b16 %v234
        %v310 = vunpack.c.l.b16 %v235
        %v311 = vunpack.c.l.b16 %v236
        %v312 = vunpack.c.l.b16 %v237
        %v313 = vunpack.c.l.b16 %v238
        %v314 = vunpack.c.l.b16 %v239
        %v315 = vunpack.c.l.b16 %v240
        %v316 = vunpack.c.l.b16 %v241
        %v317 = vunpack.c.l.b16 %v242
        %v318 = vunpack.c.l.b16 %v243
        %v319 = vunpack.c.l.b16 %v244
        %v320 = vunpack.c.l.b16 %v245
        %v321 = vunpack.c.l.b16 %v246
        %v322 = vunpack.c.l.b16 %v247
        %v323 = vunpack.c.l.b16 %v248
        %v324 = vunpack.c.l.b16 %v249
        %v325 = vunpack.c.l.b16 %v250
        %v326 = vunpack.c.l.b16 %v251
        %v327 = vunpack.c.l.b16 %v252
        %v328 = vunpack.c.l.b16 %v253
        %v329 = vunpack.c.l.b16 %v254
        %v330 = vunpack.c.l.b16 %v255
        %v331 = vunpack.c.l.b16 %v256
        %v332 = vunpack.c.l.b16 %v257
        %v333 = vunpack.c.l.b16 %v258
        %v334 = vpack.c.b16 %v303, %v302
        %v335 = vpack.c.b16 %v305, %v304
        %v336 = vpack.c.b16 %v307, %v306
        %v337 = vpack.c.b16 %v309, %v308
        %v338 = vpack.c.b16 %v311, %v310
        %v339 = vpack.c.b16 %v313, %v312
        %v340 = vpack.c.b16 %v315, %v314
        %v341 = vpack.c.b16 %v317, %v316
        %v342 = vpack.c.b16 %v319, %v318
        %v343 = vpack.c.b16 %v321, %v320
        %v344 = vpack.c.b16 %v323, %v322
        %v345 = vpack.c.b16 %v325, %v324
        %v346 = vpack.c.b16 %v327, %v326
        %v347 = vpack.c.b16 %v329, %v328
        %v348 = vpack.c.b16 %v331, %v330
        %v349 = vpack.c.b16 %v333, %v332
        %v354 = vunpack.c.l.b16 %v259
        %v355 = vunpack.c.l.b16 %v260
        %v356 = vunpack.c.l.b16 %v261
        %v357 = vunpack.c.l.b16 %v262
        %v358 = vpack.c.b16 %v355, %v354
        %v359 = vpack.c.b16 %v357, %v356
        %vm362 = vcmask 261120
        %v364 = vsel %vm362, %v334, 0
        %v367 = vsel %vm362, %v335, 0
        %v370 = vsel %vm362, %v336, 0
        %v373 = vsel %vm362, %v337, 0
        %v376 = vsel %vm362, %v338, 0
        %v379 = vsel %vm362, %v339, 0
        %v382 = vsel %vm362, %v340, 0
        %v385 = vsel %vm362, %v341, 0
        %v388 = vsel %vm362, %v342, 0
        %v391 = vsel %vm362, %v343, 0
        %v394 = vsel %vm362, %v344, 0
        %v397 = vsel %vm362, %v345, 0
        %v400 = vsel %vm362, %v346, 0
        %v403 = vsel %vm362, %v347, 0
        %v406 = vsel %vm362, %v348, 0
        %v409 = vsel %vm362, %v349, 0
        %411 = vmatprep.subr.bf16.mxu0 0
        %412 = vmatpush1.bf16.msra.mxu0 %v358
        %413 = vmatprep.subr.bf16.mxu0 0
        %414 = vmatpush1.bf16.msra.mxu0 %v359
        %415 = vmatprep.subr.bf16.mxu0 0
        %416 = vmatpush1.bf16.msra.mxu0 0
        %417 = vmatprep.subr.bf16.mxu0 0
        %418 = vmatpush1.bf16.msra.mxu0 0
        %419 = vmatprep.subr.bf16.mxu0 0
        %420 = vmatpush1.bf16.msra.mxu0 0
        %421 = vmatprep.subr.bf16.mxu0 0
        %422 = vmatpush1.bf16.msra.mxu0 0
        %423 = vmatprep.subr.bf16.mxu0 0
        %424 = vmatpush1.bf16.msra.mxu0 0
        %425 = vmatprep.subr.bf16.mxu0 0
        %426 = vmatpush1.bf16.msra.mxu0 0
        %427 = vmatprep.subr.bf16.mxu0 0
        %428 = vmatpush1.bf16.msra.mxu0 0
        %429 = vmatprep.subr.bf16.mxu0 0
        %430 = vmatpush1.bf16.msra.mxu0 0
        %431 = vmatprep.subr.bf16.mxu0 0
        %432 = vmatpush1.bf16.msra.mxu0 0
        %433 = vmatprep.subr.bf16.mxu0 0
        %434 = vmatpush1.bf16.msra.mxu0 0
        %435 = vmatprep.subr.bf16.mxu0 0
        %436 = vmatpush1.bf16.msra.mxu0 0
        %437 = vmatprep.subr.bf16.mxu0 0
        %438 = vmatpush1.bf16.msra.mxu0 0
        %439 = vmatprep.subr.bf16.mxu0 0
        %440 = vmatpush1.bf16.msra.mxu0 0
        %441 = vmatprep.subr.bf16.mxu0 0
        %442 = vmatpush1.bf16.msra.mxu0 0
        %443 = vmatprep.mubr.bf16.mxu0 0
        %444 = vmatmul.mubr.bf16.gmra.mrb[0].mxu0 %v364
        %v445 = vpop.f32.mrb[0].mxu0
        %v446 = vadd.f32 %v268, %v445
        %v447 = vpop.f32.mrb[0].mxu0
        %v448 = vpop.f32.mrb[0].mxu0
        %v449 = vadd.f32 %v268, %v448
        %v450 = vpop.f32.mrb[0].mxu0
        %451 = vmatprep.mubr.bf16.mxu0 0
        %452 = vmatmul.mubr.bf16.gmra.mrb[0].mxu0 %v367
        %v453 = vpop.f32.mrb[0].mxu0
        %v454 = vadd.f32 %v268, %v453
        %v455 = vpop.f32.mrb[0].mxu0
        %v456 = vpop.f32.mrb[0].mxu0
        %v457 = vadd.f32 %v268, %v456
        %v458 = vpop.f32.mrb[0].mxu0
        %459 = vmatprep.mubr.bf16.mxu0 0
        %460 = vmatmul.mubr.bf16.gmra.mrb[0].mxu0 %v370
        %v461 = vpop.f32.mrb[0].mxu0
        %v462 = vadd.f32 %v268, %v461
        %v463 = vpop.f32.mrb[0].mxu0
        %v464 = vpop.f32.mrb[0].mxu0
        %v465 = vadd.f32 %v268, %v464
        %v466 = vpop.f32.mrb[0].mxu0
        %467 = vmatprep.mubr.bf16.mxu0 0
        %468 = vmatmul.mubr.bf16.gmra.mrb[0].mxu0 %v373
        %v469 = vpop.f32.mrb[0].mxu0
        %v470 = vadd.f32 %v268, %v469
        %v471 = vpop.f32.mrb[0].mxu0
        %v472 = vpop.f32.mrb[0].mxu0
        %v473 = vadd.f32 %v268, %v472
        %v474 = vpop.f32.mrb[0].mxu0
        %475 = vmatprep.mubr.bf16.mxu0 0
        %476 = vmatmul.mubr.bf16.gmra.mrb[0].mxu0 %v376
        %v477 = vpop.f32.mrb[0].mxu0
        %v478 = vadd.f32 %v268, %v477
        %v479 = vpop.f32.mrb[0].mxu0
        %v480 = vpop.f32.mrb[0].mxu0
        %v481 = vadd.f32 %v268, %v480
        %v482 = vpop.f32.mrb[0].mxu0
        %483 = vmatprep.mubr.bf16.mxu0 0
        %484 = vmatmul.mubr.bf16.gmra.mrb[0].mxu0 %v379
        %v485 = vpop.f32.mrb[0].mxu0
        %v486 = vadd.f32 %v268, %v485
        %v487 = vpop.f32.mrb[0].mxu0
        %v488 = vpop.f32.mrb[0].mxu0
        %v489 = vadd.f32 %v268, %v488
        %v490 = vpop.f32.mrb[0].mxu0
        %491 = vmatprep.mubr.bf16.mxu0 0
        %492 = vmatmul.mubr.bf16.gmra.mrb[0].mxu0 %v382
        %v493 = vpop.f32.mrb[0].mxu0
        %v494 = vadd.f32 %v268, %v493
        %v495 = vpop.f32.mrb[0].mxu0
        %v496 = vpop.f32.mrb[0].mxu0
        %v497 = vadd.f32 %v268, %v496
        %v498 = vpop.f32.mrb[0].mxu0
        %499 = vmatprep.mubr.bf16.mxu0 0
        %500 = vmatmul.mubr.bf16.gmra.mrb[0].mxu0 %v385
        %v501 = vpop.f32.mrb[0].mxu0
        %v502 = vadd.f32 %v268, %v501
        %v503 = vpop.f32.mrb[0].mxu0
        %v504 = vpop.f32.mrb[0].mxu0
        %v505 = vadd.f32 %v268, %v504
        %v506 = vpop.f32.mrb[0].mxu0
        %507 = vmatprep.mubr.bf16.mxu0 0
        %508 = vmatmul.mubr.bf16.gmra.mrb[0].mxu0 %v388
        %v509 = vpop.f32.mrb[0].mxu0
        %v510 = vadd.f32 %v268, %v509
        %v511 = vpop.f32.mrb[0].mxu0
        %v512 = vpop.f32.mrb[0].mxu0
        %v513 = vadd.f32 %v268, %v512
        %v514 = vpop.f32.mrb[0].mxu0
        %515 = vmatprep.mubr.bf16.mxu0 0
        %516 = vmatmul.mubr.bf16.gmra.mrb[0].mxu0 %v391
        %v517 = vpop.f32.mrb[0].mxu0
        %v518 = vadd.f32 %v268, %v517
        %v519 = vpop.f32.mrb[0].mxu0
        %v520 = vpop.f32.mrb[0].mxu0
        %v521 = vadd.f32 %v268, %v520
        %v522 = vpop.f32.mrb[0].mxu0
        %523 = vmatprep.mubr.bf16.mxu0 0
        %524 = vmatmul.mubr.bf16.gmra.mrb[0].mxu0 %v394
        %v525 = vpop.f32.mrb[0].mxu0
        %v526 = vadd.f32 %v268, %v525
        %v527 = vpop.f32.mrb[0].mxu0
        %v528 = vpop.f32.mrb[0].mxu0
        %v529 = vadd.f32 %v268, %v528
        %v530 = vpop.f32.mrb[0].mxu0
        %531 = vmatprep.mubr.bf16.mxu0 0
        %532 = vmatmul.mubr.bf16.gmra.mrb[0].mxu0 %v397
        %v533 = vpop.f32.mrb[0].mxu0
        %v534 = vadd.f32 %v268, %v533
        %v535 = vpop.f32.mrb[0].mxu0
        %v536 = vpop.f32.mrb[0].mxu0
        %v537 = vadd.f32 %v268, %v536
        %v538 = vpop.f32.mrb[0].mxu0
        %539 = vmatprep.mubr.bf16.mxu0 0
        %540 = vmatmul.mubr.bf16.gmra.mrb[0].mxu0 %v400
        %v541 = vpop.f32.mrb[0].mxu0
        %v542 = vadd.f32 %v268, %v541
        %v543 = vpop.f32.mrb[0].mxu0
        %v544 = vpop.f32.mrb[0].mxu0
        %v545 = vadd.f32 %v268, %v544
        %v546 = vpop.f32.mrb[0].mxu0
        %547 = vmatprep.mubr.bf16.mxu0 0
        %548 = vmatmul.mubr.bf16.gmra.mrb[0].mxu0 %v403
        %v549 = vpop.f32.mrb[0].mxu0
        %v550 = vadd.f32 %v268, %v549
        %v551 = vpop.f32.mrb[0].mxu0
        %v552 = vpop.f32.mrb[0].mxu0
        %v553 = vadd.f32 %v268, %v552
        %v554 = vpop.f32.mrb[0].mxu0
        %555 = vmatprep.mubr.bf16.mxu0 0
        %556 = vmatmul.mubr.bf16.gmra.mrb[0].mxu0 %v406
        %v557 = vpop.f32.mrb[0].mxu0
        %v558 = vadd.f32 %v268, %v557
        %v559 = vpop.f32.mrb[0].mxu0
        %v560 = vpop.f32.mrb[0].mxu0
        %v561 = vadd.f32 %v268, %v560
        %v562 = vpop.f32.mrb[0].mxu0
        %563 = vmatprep.mubr.bf16.mxu0 0
        %564 = vmatmul.mubr.bf16.gmra.mrb[0].mxu0 %v409
        %v565 = vpop.f32.mrb[0].mxu0
        %v566 = vadd.f32 %v268, %v565
        %v567 = vpop.f32.mrb[0].mxu0
        %v568 = vpop.f32.mrb[0].mxu0
        %v569 = vadd.f32 %v268, %v568
        %v570 = vpop.f32.mrb[0].mxu0
        %571 = vdwg.mxu0
        %vm572 = vcmp.gt.f32.partialorder %v446, 0.0
        %vm573 = vcmp.gt.f32.partialorder %v449, 0.0
        %vm574 = vcmp.gt.f32.partialorder %v454, 0.0
        %vm575 = vcmp.gt.f32.partialorder %v457, 0.0
        %vm576 = vcmp.gt.f32.partialorder %v462, 0.0
        %vm577 = vcmp.gt.f32.partialorder %v465, 0.0
        %vm578 = vcmp.gt.f32.partialorder %v470, 0.0
        %vm579 = vcmp.gt.f32.partialorder %v473, 0.0
        %vm580 = vcmp.gt.f32.partialorder %v478, 0.0
        %vm581 = vcmp.gt.f32.partialorder %v481, 0.0
        %vm582 = vcmp.gt.f32.partialorder %v486, 0.0
        %vm583 = vcmp.gt.f32.partialorder %v489, 0.0
        %vm584 = vcmp.gt.f32.partialorder %v494, 0.0
        %vm585 = vcmp.gt.f32.partialorder %v497, 0.0
        %vm586 = vcmp.gt.f32.partialorder %v502, 0.0
        %vm587 = vcmp.gt.f32.partialorder %v505, 0.0
        %vm588 = vcmp.gt.f32.partialorder %v510, 0.0
        %vm589 = vcmp.gt.f32.partialorder %v513, 0.0
        %vm590 = vcmp.gt.f32.partialorder %v518, 0.0
        %vm591 = vcmp.gt.f32.partialorder %v521, 0.0
        %vm592 = vcmp.gt.f32.partialorder %v526, 0.0
        %vm593 = vcmp.gt.f32.partialorder %v529, 0.0
        %vm594 = vcmp.gt.f32.partialorder %v534, 0.0
        %vm595 = vcmp.gt.f32.partialorder %v537, 0.0
        %vm596 = vcmp.gt.f32.partialorder %v542, 0.0
        %vm597 = vcmp.gt.f32.partialorder %v545, 0.0
        %vm598 = vcmp.gt.f32.partialorder %v550, 0.0
        %vm599 = vcmp.gt.f32.partialorder %v553, 0.0
        %vm600 = vcmp.gt.f32.partialorder %v558, 0.0
        %vm601 = vcmp.gt.f32.partialorder %v561, 0.0
        %vm602 = vcmp.gt.f32.partialorder %v566, 0.0
        %vm603 = vcmp.gt.f32.partialorder %v569, 0.0
        %v604 = vmul.f32 %v446, 0.2
        %v605 = vmul.f32 %v449, 0.2
        %v606 = vmul.f32 %v454, 0.2
        %v607 = vmul.f32 %v457, 0.2
        %v608 = vmul.f32 %v462, 0.2
        %v609 = vmul.f32 %v465, 0.2
        %v610 = vmul.f32 %v470, 0.2
        %v611 = vmul.f32 %v473, 0.2
        %v612 = vmul.f32 %v478, 0.2
        %v613 = vmul.f32 %v481, 0.2
        %v614 = vmul.f32 %v486, 0.2
        %v615 = vmul.f32 %v489, 0.2
        %v616 = vmul.f32 %v494, 0.2
        %v617 = vmul.f32 %v497, 0.2
        %v618 = vmul.f32 %v502, 0.2
        %v619 = vmul.f32 %v505, 0.2
        %v620 = vmul.f32 %v510, 0.2
        %v621 = vmul.f32 %v513, 0.2
        %v622 = vmul.f32 %v518, 0.2
        %v623 = vmul.f32 %v521, 0.2
        %v624 = vmul.f32 %v526, 0.2
        %v625 = vmul.f32 %v529, 0.2
        %v626 = vmul.f32 %v534, 0.2
        %v627 = vmul.f32 %v537, 0.2
        %v628 = vmul.f32 %v542, 0.2
        %v629 = vmul.f32 %v545, 0.2
        %v630 = vmul.f32 %v550, 0.2
        %v631 = vmul.f32 %v553, 0.2
        %v632 = vmul.f32 %v558, 0.2
        %v633 = vmul.f32 %v561, 0.2
        %v634 = vmul.f32 %v566, 0.2
        %v635 = vmul.f32 %v569, 0.2
        %v636 = vsel %vm572, %v446, %v604
        %v637 = vsel %vm573, %v449, %v605
        %v638 = vsel %vm574, %v454, %v606
        %v639 = vsel %vm575, %v457, %v607
        %v640 = vsel %vm576, %v462, %v608
        %v641 = vsel %vm577, %v465, %v609
        %v642 = vsel %vm578, %v470, %v610
        %v643 = vsel %vm579, %v473, %v611
        %v644 = vsel %vm580, %v478, %v612
        %v645 = vsel %vm581, %v481, %v613
        %v646 = vsel %vm582, %v486, %v614
        %v647 = vsel %vm583, %v489, %v615
        %v648 = vsel %vm584, %v494, %v616
        %v649 = vsel %vm585, %v497, %v617
        %v650 = vsel %vm586, %v502, %v618
        %v651 = vsel %vm587, %v505, %v619
        %v652 = vsel %vm588, %v510, %v620
        %v653 = vsel %vm589, %v513, %v621
        %v654 = vsel %vm590, %v518, %v622
        %v655 = vsel %vm591, %v521, %v623
        %v656 = vsel %vm592, %v526, %v624
        %v657 = vsel %vm593, %v529, %v625
        %v658 = vsel %vm594, %v534, %v626
        %v659 = vsel %vm595, %v537, %v627
        %v660 = vsel %vm596, %v542, %v628
        %v661 = vsel %vm597, %v545, %v629
        %v662 = vsel %vm598, %v550, %v630
        %v663 = vsel %vm599, %v553, %v631
        %v664 = vsel %vm600, %v558, %v632
        %v665 = vsel %vm601, %v561, %v633
        %v666 = vsel %vm602, %v566, %v634
        %v667 = vsel %vm603, %v569, %v635
        %v668 = vpack.c.bf16 %v637, %v636
        %v669 = vpack.c.bf16 %v639, %v638
        %v670 = vpack.c.bf16 %v641, %v640
        %v671 = vpack.c.bf16 %v643, %v642
        %v672 = vpack.c.bf16 %v645, %v644
        %v673 = vpack.c.bf16 %v647, %v646
        %v674 = vpack.c.bf16 %v649, %v648
        %v675 = vpack.c.bf16 %v651, %v650
        %v676 = vpack.c.bf16 %v653, %v652
        %v677 = vpack.c.bf16 %v655, %v654
        %v678 = vpack.c.bf16 %v657, %v656
        %v679 = vpack.c.bf16 %v659, %v658
        %v680 = vpack.c.bf16 %v661, %v660
        %v681 = vpack.c.bf16 %v663, %v662
        %v682 = vpack.c.bf16 %v665, %v664
        %v683 = vpack.c.bf16 %v667, %v666
        %v684 = vld [vmem:[%s3] sm:$0xf]
        %v685 = vld [vmem:[%s3 + $0x4] sm:$0xf]
        %v686 = vld [vmem:[%s3 + $0x8] sm:$0xf]
        %v687 = vld [vmem:[%s3 + $0xc] sm:$0xf]
        %v688 = vld [vmem:[%s3 + $0x10] sm:$0xf]
        %v689 = vld [vmem:[%s3 + $0x14] sm:$0xf]
        %v690 = vld [vmem:[%s3 + $0x18] sm:$0xf]
        %v691 = vld [vmem:[%s3 + $0x1c] sm:$0xf]
        %v692 = vld [vmem:[%s3 + $0x20] sm:$0xf]
        %v693 = vld [vmem:[%s3 + $0x24] sm:$0xf]
        %v694 = vld [vmem:[%s3 + $0x28] sm:$0xf]
        %v695 = vld [vmem:[%s3 + $0x2c] sm:$0xf]
        %v696 = vld [vmem:[%s3 + $0x30] sm:$0xf]
        %v697 = vld [vmem:[%s3 + $0x34] sm:$0xf]
        %v698 = vld [vmem:[%s3 + $0x38] sm:$0xf]
        %v699 = vld [vmem:[%s3 + $0x3c] sm:$0xf]
        %v700 = vld [vmem:[%s4] sm:$0x1]
        %v702 = vlaneseq
        %v703 = vshrl.u32 %v702, 7
        %v704 = vsub.s32 0, %v703
        %v705 = vrot.slane %v700, %v704
        %v723 = vunpack.c.l.b16 %v684
        %v724 = vunpack.c.l.b16 %v685
        %v725 = vunpack.c.l.b16 %v686
        %v726 = vunpack.c.l.b16 %v687
        %v727 = vunpack.c.l.b16 %v688
        %v728 = vunpack.c.l.b16 %v689
        %v729 = vunpack.c.l.b16 %v690
        %v730 = vunpack.c.l.b16 %v691
        %v731 = vunpack.c.l.b16 %v692
        %v732 = vunpack.c.l.b16 %v693
        %v733 = vunpack.c.l.b16 %v694
        %v734 = vunpack.c.l.b16 %v695
        %v735 = vunpack.c.l.b16 %v696
        %v736 = vunpack.c.l.b16 %v697
        %v737 = vunpack.c.l.b16 %v698
        %v738 = vunpack.c.l.b16 %v699
        %v739 = vpack.c.b16 %v724, %v723
        %v740 = vpack.c.b16 %v726, %v725
        %v741 = vpack.c.b16 %v728, %v727
        %v742 = vpack.c.b16 %v730, %v729
        %v743 = vpack.c.b16 %v732, %v731
        %v744 = vpack.c.b16 %v734, %v733
        %v745 = vpack.c.b16 %v736, %v735
        %v746 = vpack.c.b16 %v738, %v737
        %755 = vmatprep.subr.bf16.mxu0 0
        %756 = vmatpush1.bf16.msra.mxu0 %v739
        %757 = vmatprep.subr.bf16.mxu0 0
        %758 = vmatpush1.bf16.msra.mxu0 %v740
        %759 = vmatprep.subr.bf16.mxu0 0
        %760 = vmatpush1.bf16.msra.mxu0 %v741
        %761 = vmatprep.subr.bf16.mxu0 0
        %762 = vmatpush1.bf16.msra.mxu0 %v742
        %763 = vmatprep.subr.bf16.mxu0 0
        %764 = vmatpush1.bf16.msra.mxu0 %v743
        %765 = vmatprep.subr.bf16.mxu0 0
        %766 = vmatpush1.bf16.msra.mxu0 %v744
        %767 = vmatprep.subr.bf16.mxu0 0
        %768 = vmatpush1.bf16.msra.mxu0 %v745
        %769 = vmatprep.subr.bf16.mxu0 0
        %770 = vmatpush1.bf16.msra.mxu0 %v746
        %771 = vmatprep.subr.bf16.mxu0 0
        %772 = vmatpush1.bf16.msra.mxu0 0
        %773 = vmatprep.subr.bf16.mxu0 0
        %774 = vmatpush1.bf16.msra.mxu0 0
        %775 = vmatprep.subr.bf16.mxu0 0
        %776 = vmatpush1.bf16.msra.mxu0 0
        %777 = vmatprep.subr.bf16.mxu0 0
        %778 = vmatpush1.bf16.msra.mxu0 0
        %779 = vmatprep.subr.bf16.mxu0 0
        %780 = vmatpush1.bf16.msra.mxu0 0
        %781 = vmatprep.subr.bf16.mxu0 0
        %782 = vmatpush1.bf16.msra.mxu0 0
        %783 = vmatprep.subr.bf16.mxu0 0
        %784 = vmatpush1.bf16.msra.mxu0 0
        %785 = vmatprep.subr.bf16.mxu0 0
        %786 = vmatpush1.bf16.msra.mxu0 0
        %787 = vmatprep.mubr.bf16.mxu0 0
        %788 = vmatmul.mubr.bf16.gmra.mrb[0].mxu0 %v668
        %v789 = vpop.f32.mrb[0].mxu0
        %v790 = vadd.f32 %v705, %v789
        %v791 = vpop.f32.mrb[0].mxu0
        %v792 = vpop.f32.mrb[0].mxu0
        %v793 = vadd.f32 %v705, %v792
        %v794 = vpop.f32.mrb[0].mxu0
        %795 = vmatprep.mubr.bf16.mxu0 0
        %796 = vmatmul.mubr.bf16.gmra.mrb[0].mxu0 %v669
        %v797 = vpop.f32.mrb[0].mxu0
        %v798 = vadd.f32 %v705, %v797
        %v799 = vpop.f32.mrb[0].mxu0
        %v800 = vpop.f32.mrb[0].mxu0
        %v801 = vadd.f32 %v705, %v800
        %v802 = vpop.f32.mrb[0].mxu0
        %803 = vmatprep.mubr.bf16.mxu0 0
        %804 = vmatmul.mubr.bf16.gmra.mrb[0].mxu0 %v670
        %v805 = vpop.f32.mrb[0].mxu0
        %v806 = vadd.f32 %v705, %v805
        %v807 = vpop.f32.mrb[0].mxu0
        %v808 = vpop.f32.mrb[0].mxu0
        %v809 = vadd.f32 %v705, %v808
        %v810 = vpop.f32.mrb[0].mxu0
        %811 = vmatprep.mubr.bf16.mxu0 0
        %812 = vmatmul.mubr.bf16.gmra.mrb[0].mxu0 %v671
        %v813 = vpop.f32.mrb[0].mxu0
        %v814 = vadd.f32 %v705, %v813
        %v815 = vpop.f32.mrb[0].mxu0
        %v816 = vpop.f32.mrb[0].mxu0
        %v817 = vadd.f32 %v705, %v816
        %v818 = vpop.f32.mrb[0].mxu0
        %819 = vmatprep.mubr.bf16.mxu0 0
        %820 = vmatmul.mubr.bf16.gmra.mrb[0].mxu0 %v672
        %v821 = vpop.f32.mrb[0].mxu0
        %v822 = vadd.f32 %v705, %v821
        %v823 = vpop.f32.mrb[0].mxu0
        %v824 = vpop.f32.mrb[0].mxu0
        %v825 = vadd.f32 %v705, %v824
        %v826 = vpop.f32.mrb[0].mxu0
        %827 = vmatprep.mubr.bf16.mxu0 0
        %828 = vmatmul.mubr.bf16.gmra.mrb[0].mxu0 %v673
        %v829 = vpop.f32.mrb[0].mxu0
        %v830 = vadd.f32 %v705, %v829
        %v831 = vpop.f32.mrb[0].mxu0
        %v832 = vpop.f32.mrb[0].mxu0
        %v833 = vadd.f32 %v705, %v832
        %v834 = vpop.f32.mrb[0].mxu0
        %835 = vmatprep.mubr.bf16.mxu0 0
        %836 = vmatmul.mubr.bf16.gmra.mrb[0].mxu0 %v674
        %v837 = vpop.f32.mrb[0].mxu0
        %v838 = vadd.f32 %v705, %v837
        %v839 = vpop.f32.mrb[0].mxu0
        %v840 = vpop.f32.mrb[0].mxu0
        %v841 = vadd.f32 %v705, %v840
        %v842 = vpop.f32.mrb[0].mxu0
        %843 = vmatprep.mubr.bf16.mxu0 0
        %844 = vmatmul.mubr.bf16.gmra.mrb[0].mxu0 %v675
        %v845 = vpop.f32.mrb[0].mxu0
        %v846 = vadd.f32 %v705, %v845
        %v847 = vpop.f32.mrb[0].mxu0
        %v848 = vpop.f32.mrb[0].mxu0
        %v849 = vadd.f32 %v705, %v848
        %v850 = vpop.f32.mrb[0].mxu0
        %851 = vmatprep.mubr.bf16.mxu0 0
        %852 = vmatmul.mubr.bf16.gmra.mrb[0].mxu0 %v676
        %v853 = vpop.f32.mrb[0].mxu0
        %v854 = vadd.f32 %v705, %v853
        %v855 = vpop.f32.mrb[0].mxu0
        %v856 = vpop.f32.mrb[0].mxu0
        %v857 = vadd.f32 %v705, %v856
        %v858 = vpop.f32.mrb[0].mxu0
        %859 = vmatprep.mubr.bf16.mxu0 0
        %860 = vmatmul.mubr.bf16.gmra.mrb[0].mxu0 %v677
        %v861 = vpop.f32.mrb[0].mxu0
        %v862 = vadd.f32 %v705, %v861
        %v863 = vpop.f32.mrb[0].mxu0
        %v864 = vpop.f32.mrb[0].mxu0
        %v865 = vadd.f32 %v705, %v864
        %v866 = vpop.f32.mrb[0].mxu0
        %867 = vmatprep.mubr.bf16.mxu0 0
        %868 = vmatmul.mubr.bf16.gmra.mrb[0].mxu0 %v678
        %v869 = vpop.f32.mrb[0].mxu0
        %v870 = vadd.f32 %v705, %v869
        %v871 = vpop.f32.mrb[0].mxu0
        %v872 = vpop.f32.mrb[0].mxu0
        %v873 = vadd.f32 %v705, %v872
        %v874 = vpop.f32.mrb[0].mxu0
        %875 = vmatprep.mubr.bf16.mxu0 0
        %876 = vmatmul.mubr.bf16.gmra.mrb[0].mxu0 %v679
        %v877 = vpop.f32.mrb[0].mxu0
        %v878 = vadd.f32 %v705, %v877
        %v879 = vpop.f32.mrb[0].mxu0
        %v880 = vpop.f32.mrb[0].mxu0
        %v881 = vadd.f32 %v705, %v880
        %v882 = vpop.f32.mrb[0].mxu0
        %883 = vmatprep.mubr.bf16.mxu0 0
        %884 = vmatmul.mubr.bf16.gmra.mrb[0].mxu0 %v680
        %v885 = vpop.f32.mrb[0].mxu0
        %v886 = vadd.f32 %v705, %v885
        %v887 = vpop.f32.mrb[0].mxu0
        %v888 = vpop.f32.mrb[0].mxu0
        %v889 = vadd.f32 %v705, %v888
        %v890 = vpop.f32.mrb[0].mxu0
        %891 = vmatprep.mubr.bf16.mxu0 0
        %892 = vmatmul.mubr.bf16.gmra.mrb[0].mxu0 %v681
        %v893 = vpop.f32.mrb[0].mxu0
        %v894 = vadd.f32 %v705, %v893
        %v895 = vpop.f32.mrb[0].mxu0
        %v896 = vpop.f32.mrb[0].mxu0
        %v897 = vadd.f32 %v705, %v896
        %v898 = vpop.f32.mrb[0].mxu0
        %899 = vmatprep.mubr.bf16.mxu0 0
        %900 = vmatmul.mubr.bf16.gmra.mrb[0].mxu0 %v682
        %v901 = vpop.f32.mrb[0].mxu0
        %v902 = vadd.f32 %v705, %v901
        %v903 = vpop.f32.mrb[0].mxu0
        %v904 = vpop.f32.mrb[0].mxu0
        %v905 = vadd.f32 %v705, %v904
        %v906 = vpop.f32.mrb[0].mxu0
        %907 = vmatprep.mubr.bf16.mxu0 0
        %908 = vmatmul.mubr.bf16.gmra.mrb[0].mxu0 %v683
        %v909 = vpop.f32.mrb[0].mxu0
        %v910 = vadd.f32 %v705, %v909
        %v911 = vpop.f32.mrb[0].mxu0
        %v912 = vpop.f32.mrb[0].mxu0
        %v913 = vadd.f32 %v705, %v912
        %v914 = vpop.f32.mrb[0].mxu0
        %915 = vdwg.mxu0
        %916 = vst [vmem:[%s218] sm:$0xff] %v790
        %917 = vst [vmem:[%s218 + $0x8] sm:$0xff] %v793
        %918 = vst [vmem:[%s218 + $0x10] sm:$0xff] %v798
        %919 = vst [vmem:[%s218 + $0x18] sm:$0xff] %v801
        %920 = vst [vmem:[%s218 + $0x20] sm:$0xff] %v806
        %921 = vst [vmem:[%s218 + $0x28] sm:$0xff] %v809
        %922 = vst [vmem:[%s218 + $0x30] sm:$0xff] %v814
        %923 = vst [vmem:[%s218 + $0x38] sm:$0xff] %v817
        %924 = vst [vmem:[%s218 + $0x40] sm:$0xff] %v822
        %925 = vst [vmem:[%s218 + $0x48] sm:$0xff] %v825
        %926 = vst [vmem:[%s218 + $0x50] sm:$0xff] %v830
        %927 = vst [vmem:[%s218 + $0x58] sm:$0xff] %v833
        %928 = vst [vmem:[%s218 + $0x60] sm:$0xff] %v838
        %929 = vst [vmem:[%s218 + $0x68] sm:$0xff] %v841
        %930 = vst [vmem:[%s218 + $0x70] sm:$0xff] %v846
        %931 = vst [vmem:[%s218 + $0x78] sm:$0xff] %v849
        %932 = vst [vmem:[%s218 + $0x80] sm:$0xff] %v854
        %933 = vst [vmem:[%s218 + $0x88] sm:$0xff] %v857
        %934 = vst [vmem:[%s218 + $0x90] sm:$0xff] %v862
        %935 = vst [vmem:[%s218 + $0x98] sm:$0xff] %v865
        %936 = vst [vmem:[%s218 + $0xa0] sm:$0xff] %v870
        %937 = vst [vmem:[%s218 + $0xa8] sm:$0xff] %v873
        %938 = vst [vmem:[%s218 + $0xb0] sm:$0xff] %v878
        %939 = vst [vmem:[%s218 + $0xb8] sm:$0xff] %v881
        %940 = vst [vmem:[%s218 + $0xc0] sm:$0xff] %v886
        %941 = vst [vmem:[%s218 + $0xc8] sm:$0xff] %v889
        %942 = vst [vmem:[%s218 + $0xd0] sm:$0xff] %v894
        %943 = vst [vmem:[%s218 + $0xd8] sm:$0xff] %v897
        %944 = vst [vmem:[%s218 + $0xe0] sm:$0xff] %v902
        %945 = vst [vmem:[%s218 + $0xe8] sm:$0xff] %v905
        %946 = vst [vmem:[%s218 + $0xf0] sm:$0xff] %v910
        %947 = vst [vmem:[%s218 + $0xf8] sm:$0xff] %v913
        %s948 = sand.u32 %s137, 1
        %s949 = scalar_lea.sflag [#allocation3], %s948
        %s950 = sand.u32 %s137, 1
        %s951 = smul.addr %s950, 256
        %s952 = scalar_lea.vmem [#allocation2], %s951
        // Predicated region
        $region41: #{tpu_custom_call.1} parent=39 // pred_check
          %p953 = pneg %p147
        $region42: #{tpu_custom_call.1} parent=39 // pred_check_branch
          %955 = sbr.rel (%p953) target = $region44
        $region43: #{tpu_custom_call.1} parent=39 // pred_region
          %s956 = smul.u32 32, %s19
          %s958 = ssub.s32 4096, 4096
          %959 = vsyncadd %s949, %s958
          %s960 = smul.addr %s956, 128
          %s961 = scalar_lea.hbm %s5, %s960
          %s962 = sshll.u32 %s952, 4
          %s963 = int_to_ptr.vmem [resolvable:$true] %s962
          %968 = dma.vmem_to_hbm [thread:$0]  %s963, 4096, %s961, %s949, 128, 128, 8
        $region44: #{tpu_custom_call.1} parent=39 // pred_fallthru
          _
      $region40: #{tpu_custom_call.1} parent=5 // pred_fallthru
        _
      %p969 = scmp.le.s32.totalorder 2, %s14
      // Predicated region
      $region45: #{tpu_custom_call.1} parent=5 // pred_check
        %p970 = pneg %p969
      $region46: #{tpu_custom_call.1} parent=5 // pred_check_branch
        %972 = sbr.rel (%p970) target = $region48
      $region47: #{tpu_custom_call.1} parent=5 // pred_region
        %s973 = ssub.s32 %s14, 2
        // Predicated region
        $region49: #{tpu_custom_call.1} parent=47 // pred_check
          %p974 = pneg %p153
        $region50: #{tpu_custom_call.1} parent=47 // pred_check_branch
          %976 = sbr.rel (%p974) target = $region52
        $region51: #{tpu_custom_call.1} parent=47 // pred_region
          %s977 = sand.u32 %s138, 1
          %s978 = scalar_lea.sflag [#allocation3], %s977
          %s979 = sand.u32 %s138, 1
          %s980 = smul.addr %s979, 256
          %s981 = scalar_lea.vmem [#allocation2], %s980
          %982 = dma.done %s978, 4096
        $region52: #{tpu_custom_call.1} parent=47 // pred_fallthru
          _
      $region48: #{tpu_custom_call.1} parent=5 // pred_fallthru
        _
    $region6: #{tpu_custom_call.1} parent=1 // loop_footer
      %s18 = sadd.s32 1, %s14
    $region7: #{tpu_custom_call.1} parent=1 // loop_footer_branch
      %13 = sbr.rel target = $region3
    $region8: #{tpu_custom_call.1} parent=1 // loop_exit
      _
    %983 = vsyncpa [#allocation3], 1
    %s984 = scalar_lea.sflag [#allocation3], 1
    %985 = vsyncpa %s984, 1

</llo_original>
